<compile_context>
chip_gen: v6e
topology: v6e:2x2x1
jax: 0.10.0
libtpu: 0.0.40
codegen_flags: <defaults>
</compile_context>

<pallas_src>
import jax
import jax.numpy as jnp
from jax.experimental import pallas as pl
from jax.experimental.pallas import tpu as pltpu


# ------------------------------ Pallas kernel -------------------------------

def block_kernel(x_ref, s0_ref, d0_ref, s1_ref, d1_ref,
                 w0_ref, b0_ref, w1_ref, b1_ref, wrgb_ref, brgb_ref,
                 out_ref, rgb_ref):
    """Fused IndependentStyleGAN2Block (depth=2), channel-major (C, N) layout.

    x_ref   : (1, Ci, TN)   input pixels for this (batch, pixel-tile)
    s*_ref  : (1, 1, C)     per-batch style (modulation) vectors
    d*_ref  : (1, C, 1)     per-batch demodulation vectors
    w*_ref  : (Co, Ci)      conv weights (out_ch, in_ch); b*_ref: (C, 1)
    wrgb_ref: (8, Co)       RGB weight padded to 8 rows; brgb_ref: (8, 1)
    out_ref : (1, Co, TN)   block output features
    rgb_ref : (1, 3, TN)    RGB head output
    """
    x = x_ref[0]                                                   # (Ci, TN)

    # conv0 (Ci -> Ci): fold modulation (input columns) and demodulation
    # (output rows) into the weight matrix, then one MXU matmul.
    w0e = w0_ref[...] * s0_ref[0] * d0_ref[0]                      # (Ci, Ci)
    h = jnp.dot(w0e, x, preferred_element_type=jnp.float32) + b0_ref[...]

    # conv1 (Ci -> Co)
    w1e = w1_ref[...] * s1_ref[0] * d1_ref[0]                      # (Co, Ci)
    h = jnp.dot(w1e, h, preferred_element_type=jnp.float32) + b1_ref[...]
    out_ref[0] = h                                                 # (Co, TN)

    # RGB head (Co -> 3): weights pre-padded to 8 sublane-aligned rows,
    # rows 3..7 are zero; write only the 3 real rows (lane-dense store).
    rgb8 = jnp.dot(wrgb_ref[...], h,
                   preferred_element_type=jnp.float32) + brgb_ref[...]
    rgb_ref[0] = rgb8[0:3, :]                                      # (3, TN)


# ------------------------------ wrapper --------------------------------------

def _pick_pixel_tile(n, max_tile=2048):
    """Largest pixel tile <= max_tile that divides N (lane-friendly)."""
    if n <= max_tile:
        return n
    for t in range(max_tile, 0, -128):
        if n % t == 0:
            return t
    return n


def independent_stylegan2_block(x_nchw, condition, p):
    """Forward pass of IndependentStyleGAN2Block. Returns (out, rgb) in NCHW."""
    eps = 1e-8
    B, Ci, H, W = x_nchw.shape
    N = H * W
    Co = p["w1"].shape[0]
    x = x_nchw.reshape(B, Ci, N)                # NCHW -> (B, C, N): pure reshape

    # Condition-only style / demodulation vectors, hoisted out of the kernel
    # (tiny: O(B*C)).  d[o] = rsqrt(sum_i (w[o,i] * s[i])^2 + eps).
    s0 = condition @ p["wc0"]                                              # (B, Ci)
    d0 = jax.lax.rsqrt(jnp.einsum("bi,oi->bo", s0 * s0,
                                  p["w0"] * p["w0"]) + eps)                # (B, Ci)
    s1 = condition @ p["wc1"]                                              # (B, Ci)
    d1 = jax.lax.rsqrt(jnp.einsum("bi,oi->bo", s1 * s1,
                                  p["w1"] * p["w1"]) + eps)                # (B, Co)

    TN = _pick_pixel_tile(N)
    grid = (B, N // TN)

    per_batch = lambda shape: pl.BlockSpec(shape, lambda b, n: (b, 0, 0))
    shared2d = lambda shape: pl.BlockSpec(shape, lambda b, n: (0, 0))

    out, rgb = pl.pallas_call(
        block_kernel,
        out_shape=(jax.ShapeDtypeStruct((B, Co, N), jnp.float32),
                   jax.ShapeDtypeStruct((B, 3, N), jnp.float32)),
        grid=grid,
        in_specs=[
            pl.BlockSpec((1, Ci, TN), lambda b, n: (b, 0, n)),   # x
            per_batch((1, 1, Ci)),                               # s0
            per_batch((1, Ci, 1)),                               # d0
            per_batch((1, 1, Ci)),                               # s1
            per_batch((1, Co, 1)),                               # d1
            shared2d((Ci, Ci)),                                  # w0
            shared2d((Ci, 1)),                                   # b0
            shared2d((Co, Ci)),                                  # w1
            shared2d((Co, 1)),                                   # b1
            shared2d((8, Co)),                                   # wrgb (padded)
            shared2d((8, 1)),                                    # brgb (padded)
        ],
        out_specs=(pl.BlockSpec((1, Co, TN), lambda b, n: (b, 0, n)),
                   pl.BlockSpec((1, 3, TN), lambda b, n: (b, 0, n))),
        compiler_params=pltpu.CompilerParams(
            dimension_semantics=("parallel", "parallel")),
    )(x, s0[:, None, :], d0[:, :, None], s1[:, None, :], d1[:, :, None],
      p["w0"], p["b0"][:, None], p["w1"], p["b1"][:, None],
      p["wrgb"], p["brgb"][:, None])

    return out.reshape(B, Co, H, W), rgb.reshape(B, 3, H, W)


# ------------------------------ parameters -----------------------------------

def init_params(key, in_size, out_size, cond_size):
    """Parameters for depth=2 (module default); lr_equal scales folded in."""
    keys = iter(jax.random.split(key, 16))

    def normal(shape, std=0.1):
        return std * jax.random.normal(next(keys), shape, jnp.float32)

    Ci, Co, S = in_size, out_size, cond_size
    lr_cond = (2.0 / S) ** 0.5    # lr_equal(Linear(S, Ci, bias=False)): fan_in = S
    lr_rgb = (2.0 / Co) ** 0.5    # lr_equal(Conv2d(Co, 3, 1)): fan_in = Co * 1 * 1

    wc0 = normal((Ci, S))                       # Linear(S, Ci) weight (out, in)
    wc1 = normal((Ci, S))
    w0 = normal((Ci, Ci)); b0 = normal((Ci,))   # Conv2d(Ci, Ci, 1) weight (out, in)
    w1 = normal((Co, Ci)); b1 = normal((Co,))   # Conv2d(Ci, Co, 1)
    wrgb = normal((3, Co)); brgb = normal((3,)) # Conv2d(Co, 3, 1)
    # noise_scale params init to zero AND the generated noise is never added in
    # the reference forward -> no output effect, intentionally omitted.

    return dict(
        wc0=(lr_cond * wc0).T,                                  # (S, Ci)
        wc1=(lr_cond * wc1).T,                                  # (S, Ci)
        w0=w0, b0=b0,
        w1=w1, b1=b1,
        wrgb=jnp.pad(lr_rgb * wrgb, ((0, 5), (0, 0))),          # (8, Co), rows 3..7 zero
        brgb=jnp.pad(brgb, ((0, 5),)),                          # (8,)
    )


# ------------------------------ pure-JAX reference ---------------------------

def reference_forward(x_nchw, condition, p):
    """Standard StyleGAN2 formulation (modulate input, conv, demod, + bias)."""
    eps = 1e-8
    B, Ci, H, W = x_nchw.shape
    x = x_nchw.reshape(B, Ci, H * W)

    s0 = condition @ p["wc0"]
    d0 = jax.lax.rsqrt(jnp.einsum("bi,oi->bo", s0 * s0, p["w0"] ** 2) + eps)
    h = (jnp.einsum("oi,bin->bon", p["w0"], x * s0[:, :, None])
         * d0[:, :, None] + p["b0"][None, :, None])

    s1 = condition @ p["wc1"]
    d1 = jax.lax.rsqrt(jnp.einsum("bi,oi->bo", s1 * s1, p["w1"] ** 2) + eps)
    h = (jnp.einsum("oi,bin->bon", p["w1"], h * s1[:, :, None])
         * d1[:, :, None] + p["b1"][None, :, None])

    rgb = jnp.einsum("oi,bin->bon", p["wrgb"][:3], h) + p["brgb"][:3][None, :, None]
    Co = h.shape[1]
    return h.reshape(B, Co, H, W), rgb.reshape(B, 3, H, W)


# ------------------------------------ main -----------------------------------

if __name__ == "__main__":
    B, H, W = 2, 16, 16
    in_size, out_size, cond_size = 16, 32, 32

    key = jax.random.PRNGKey(0)
    kx, kc, kp = jax.random.split(key, 3)
    x = jax.random.normal(kx, (B, in_size, H, W), jnp.float32)
    condition = jax.random.normal(kc, (B, cond_size), jnp.float32)
    params = init_params(kp, in_size, out_size, cond_size)

    fwd = jax.jit(lambda xx, cc: independent_stylegan2_block(xx, cc, params))
    out, rgb = jax.block_until_ready(fwd(x, condition))

    out_ref, rgb_ref = reference_forward(x, condition, params)
    assert out.shape == out_ref.shape == (B, out_size, H, W)
    assert rgb.shape == rgb_ref.shape == (B, 3, H, W)
    # Tight tolerance: the kernel only rearranges the demod algebra, so the
    # f32 result should match the reference to rounding error.
    assert float(jnp.max(jnp.abs(out - out_ref))) < 1e-4
    assert float(jnp.max(jnp.abs(rgb - rgb_ref))) < 1e-4

    print("KERNEL_OK")
</pallas_src>

<mosaic_0001>
module attributes {stable_mosaic.version = 11 : i64} {
  func.func @block_kernel(%arg0: i32, %arg1: i32, %arg2: memref<1x16x256xf32, #tpu.memory_space<vmem>>, %arg3: memref<1x1x16xf32, #tpu.memory_space<vmem>>, %arg4: memref<1x16x1xf32, #tpu.memory_space<vmem>>, %arg5: memref<1x1x16xf32, #tpu.memory_space<vmem>>, %arg6: memref<1x32x1xf32, #tpu.memory_space<vmem>>, %arg7: memref<16x16xf32, #tpu.memory_space<vmem>>, %arg8: memref<16x1xf32, #tpu.memory_space<vmem>>, %arg9: memref<32x16xf32, #tpu.memory_space<vmem>>, %arg10: memref<32x1xf32, #tpu.memory_space<vmem>>, %arg11: memref<8x32xf32, #tpu.memory_space<vmem>>, %arg12: memref<8x1xf32, #tpu.memory_space<vmem>>, %arg13: memref<1x32x256xf32, #tpu.memory_space<vmem>>, %arg14: memref<1x3x256xf32, #tpu.memory_space<vmem>>) attributes {dimension_semantics = [#tpu.dimension_semantics<parallel>, #tpu.dimension_semantics<parallel>], iteration_bounds = array<i64: 2, 1>, scalar_prefetch = 0 : i64, scratch_operands = 0 : i64, tpu.core_type = #tpu.core_type<tc>, window_params = [{transform_indices = @transform_0, window_bounds = array<i64: 1, 16, 256>}, {transform_indices = @transform_1, window_bounds = array<i64: 1, 1, 16>}, {transform_indices = @transform_2, window_bounds = array<i64: 1, 16, 1>}, {transform_indices = @transform_3, window_bounds = array<i64: 1, 1, 16>}, {transform_indices = @transform_4, window_bounds = array<i64: 1, 32, 1>}, {pipeline_mode = #tpu.pipeline_mode<synchronous>, transform_indices = @transform_5, window_bounds = array<i64: 16, 16>}, {pipeline_mode = #tpu.pipeline_mode<synchronous>, transform_indices = @transform_6, window_bounds = array<i64: 16, 1>}, {pipeline_mode = #tpu.pipeline_mode<synchronous>, transform_indices = @transform_7, window_bounds = array<i64: 32, 16>}, {pipeline_mode = #tpu.pipeline_mode<synchronous>, transform_indices = @transform_8, window_bounds = array<i64: 32, 1>}, {pipeline_mode = #tpu.pipeline_mode<synchronous>, transform_indices = @transform_9, window_bounds = array<i64: 8, 32>}, {pipeline_mode = #tpu.pipeline_mode<synchronous>, transform_indices = @transform_10, window_bounds = array<i64: 8, 1>}, {transform_indices = @transform_11, window_bounds = array<i64: 1, 32, 256>}, {transform_indices = @transform_12, window_bounds = array<i64: 1, 3, 256>}]} {
    %c0 = arith.constant 0 : index
    %c0_0 = arith.constant 0 : index
    %c0_1 = arith.constant 0 : index
    %0 = vector.load %arg2[%c0, %c0_0, %c0_1] : memref<1x16x256xf32, #tpu.memory_space<vmem>>, vector<1x16x256xf32>
    %1 = vector.shape_cast %0 : vector<1x16x256xf32> to vector<16x256xf32>
    %c0_2 = arith.constant 0 : index
    %c0_3 = arith.constant 0 : index
    %2 = vector.load %arg7[%c0_2, %c0_3] : memref<16x16xf32, #tpu.memory_space<vmem>>, vector<16x16xf32>
    %c0_4 = arith.constant 0 : index
    %c0_5 = arith.constant 0 : index
    %c0_6 = arith.constant 0 : index
    %3 = vector.load %arg3[%c0_4, %c0_5, %c0_6] : memref<1x1x16xf32, #tpu.memory_space<vmem>>, vector<1x1x16xf32>
    %4 = vector.shape_cast %3 : vector<1x1x16xf32> to vector<1x16xf32>
    %5 = vector.broadcast %4 : vector<1x16xf32> to vector<16x16xf32>
    %6 = arith.mulf %2, %5 : vector<16x16xf32>
    %c0_7 = arith.constant 0 : index
    %c0_8 = arith.constant 0 : index
    %c0_9 = arith.constant 0 : index
    %7 = vector.load %arg4[%c0_7, %c0_8, %c0_9] : memref<1x16x1xf32, #tpu.memory_space<vmem>>, vector<1x16x1xf32>
    %8 = vector.shape_cast %7 : vector<1x16x1xf32> to vector<16x1xf32>
    %9 = vector.broadcast %8 : vector<16x1xf32> to vector<16x16xf32>
    %10 = arith.mulf %6, %9 : vector<16x16xf32>
    %cst = arith.constant dense<0.000000e+00> : vector<16x256xf32>
    %11 = tpu.matmul %10, %1, %cst {dimension_numbers = #tpu.dot_dimension_numbers<[1], [0], [0], [1], [0, 0, 1, 1], [], []>} : vector<16x16xf32>, vector<16x256xf32>, vector<16x256xf32> -> vector<16x256xf32>
    %c0_10 = arith.constant 0 : index
    %c0_11 = arith.constant 0 : index
    %12 = vector.load %arg8[%c0_10, %c0_11] : memref<16x1xf32, #tpu.memory_space<vmem>>, vector<16x1xf32>
    %13 = vector.broadcast %12 : vector<16x1xf32> to vector<16x256xf32>
    %14 = arith.addf %11, %13 : vector<16x256xf32>
    %c0_12 = arith.constant 0 : index
    %c0_13 = arith.constant 0 : index
    %15 = vector.load %arg9[%c0_12, %c0_13] : memref<32x16xf32, #tpu.memory_space<vmem>>, vector<32x16xf32>
    %c0_14 = arith.constant 0 : index
    %c0_15 = arith.constant 0 : index
    %c0_16 = arith.constant 0 : index
    %16 = vector.load %arg5[%c0_14, %c0_15, %c0_16] : memref<1x1x16xf32, #tpu.memory_space<vmem>>, vector<1x1x16xf32>
    %17 = vector.shape_cast %16 : vector<1x1x16xf32> to vector<1x16xf32>
    %18 = vector.broadcast %17 : vector<1x16xf32> to vector<32x16xf32>
    %19 = arith.mulf %15, %18 : vector<32x16xf32>
    %c0_17 = arith.constant 0 : index
    %c0_18 = arith.constant 0 : index
    %c0_19 = arith.constant 0 : index
    %20 = vector.load %arg6[%c0_17, %c0_18, %c0_19] : memref<1x32x1xf32, #tpu.memory_space<vmem>>, vector<1x32x1xf32>
    %21 = vector.shape_cast %20 : vector<1x32x1xf32> to vector<32x1xf32>
    %22 = vector.broadcast %21 : vector<32x1xf32> to vector<32x16xf32>
    %23 = arith.mulf %19, %22 : vector<32x16xf32>
    %cst_20 = arith.constant dense<0.000000e+00> : vector<32x256xf32>
    %24 = tpu.matmul %23, %14, %cst_20 {dimension_numbers = #tpu.dot_dimension_numbers<[1], [0], [0], [1], [0, 0, 1, 1], [], []>} : vector<32x16xf32>, vector<16x256xf32>, vector<32x256xf32> -> vector<32x256xf32>
    %c0_21 = arith.constant 0 : index
    %c0_22 = arith.constant 0 : index
    %25 = vector.load %arg10[%c0_21, %c0_22] : memref<32x1xf32, #tpu.memory_space<vmem>>, vector<32x1xf32>
    %26 = vector.broadcast %25 : vector<32x1xf32> to vector<32x256xf32>
    %27 = arith.addf %24, %26 : vector<32x256xf32>
    %c0_23 = arith.constant 0 : index
    %c0_24 = arith.constant 0 : index
    %c0_25 = arith.constant 0 : index
    %28 = vector.load %arg13[%c0_23, %c0_24, %c0_25] : memref<1x32x256xf32, #tpu.memory_space<vmem>>, vector<1x32x256xf32>
    %29 = vector.shape_cast %28 : vector<1x32x256xf32> to vector<32x256xf32>
    %30 = vector.shape_cast %27 : vector<32x256xf32> to vector<1x32x256xf32>
    tpu.vector_store %arg13[%c0_23, %c0_24, %c0_25], %30 {strides = array<i32>} : memref<1x32x256xf32, #tpu.memory_space<vmem>>, vector<1x32x256xf32>,
    %c0_26 = arith.constant 0 : index
    %c0_27 = arith.constant 0 : index
    %31 = vector.load %arg11[%c0_26, %c0_27] : memref<8x32xf32, #tpu.memory_space<vmem>>, vector<8x32xf32>
    %cst_28 = arith.constant dense<0.000000e+00> : vector<8x256xf32>
    %32 = tpu.matmul %31, %27, %cst_28 {dimension_numbers = #tpu.dot_dimension_numbers<[1], [0], [0], [1], [0, 0, 1, 1], [], []>} : vector<8x32xf32>, vector<32x256xf32>, vector<8x256xf32> -> vector<8x256xf32>
    %c0_29 = arith.constant 0 : index
    %c0_30 = arith.constant 0 : index
    %33 = vector.load %arg12[%c0_29, %c0_30] : memref<8x1xf32, #tpu.memory_space<vmem>>, vector<8x1xf32>
    %34 = vector.broadcast %33 : vector<8x1xf32> to vector<8x256xf32>
    %35 = arith.addf %32, %34 : vector<8x256xf32>
    %36 = vector.extract_strided_slice %35 {offsets = [0, 0], sizes = [3, 256], strides = [1, 1]} : vector<8x256xf32> to vector<3x256xf32>
    %c0_31 = arith.constant 0 : index
    %c0_32 = arith.constant 0 : index
    %c0_33 = arith.constant 0 : index
    %37 = vector.load %arg14[%c0_31, %c0_32, %c0_33] : memref<1x3x256xf32, #tpu.memory_space<vmem>>, vector<1x3x256xf32>
    %38 = vector.shape_cast %37 : vector<1x3x256xf32> to vector<3x256xf32>
    %39 = vector.shape_cast %36 : vector<3x256xf32> to vector<1x3x256xf32>
    tpu.vector_store %arg14[%c0_31, %c0_32, %c0_33], %39 {strides = array<i32>} : memref<1x3x256xf32, #tpu.memory_space<vmem>>, vector<1x3x256xf32>,
    return
  }
  func.func @transform_0(%arg0: i32, %arg1: i32) -> (i32, i32, i32) {
    %c0_i32 = arith.constant 0 : i32
    %c0_i32_0 = arith.constant 0 : i32
    return %arg0, %c0_i32, %arg1 : i32, i32, i32
  }
  func.func @transform_1(%arg0: i32, %arg1: i32) -> (i32, i32, i32) {
    %c0_i32 = arith.constant 0 : i32
    %c0_i32_0 = arith.constant 0 : i32
    %c0_i32_1 = arith.constant 0 : i32
    return %arg0, %c0_i32, %c0_i32_0 : i32, i32, i32
  }
  func.func @transform_2(%arg0: i32, %arg1: i32) -> (i32, i32, i32) {
    %c0_i32 = arith.constant 0 : i32
    %c0_i32_0 = arith.constant 0 : i32
    %c0_i32_1 = arith.constant 0 : i32
    return %arg0, %c0_i32, %c0_i32_0 : i32, i32, i32
  }
  func.func @transform_3(%arg0: i32, %arg1: i32) -> (i32, i32, i32) {
    %c0_i32 = arith.constant 0 : i32
    %c0_i32_0 = arith.constant 0 : i32
    %c0_i32_1 = arith.constant 0 : i32
    return %arg0, %c0_i32, %c0_i32_0 : i32, i32, i32
  }
  func.func @transform_4(%arg0: i32, %arg1: i32) -> (i32, i32, i32) {
    %c0_i32 = arith.constant 0 : i32
    %c0_i32_0 = arith.constant 0 : i32
    %c0_i32_1 = arith.constant 0 : i32
    return %arg0, %c0_i32, %c0_i32_0 : i32, i32, i32
  }
  func.func @transform_5(%arg0: i32, %arg1: i32) -> (i32, i32) {
    %c0_i32 = arith.constant 0 : i32
    %c0_i32_0 = arith.constant 0 : i32
    %c0_i32_1 = arith.constant 0 : i32
    return %c0_i32, %c0_i32_0 : i32, i32
  }
  func.func @transform_6(%arg0: i32, %arg1: i32) -> (i32, i32) {
    %c0_i32 = arith.constant 0 : i32
    %c0_i32_0 = arith.constant 0 : i32
    %c0_i32_1 = arith.constant 0 : i32
    return %c0_i32, %c0_i32_0 : i32, i32
  }
  func.func @transform_7(%arg0: i32, %arg1: i32) -> (i32, i32) {
    %c0_i32 = arith.constant 0 : i32
    %c0_i32_0 = arith.constant 0 : i32
    %c0_i32_1 = arith.constant 0 : i32
    return %c0_i32, %c0_i32_0 : i32, i32
  }
  func.func @transform_8(%arg0: i32, %arg1: i32) -> (i32, i32) {
    %c0_i32 = arith.constant 0 : i32
    %c0_i32_0 = arith.constant 0 : i32
    %c0_i32_1 = arith.constant 0 : i32
    return %c0_i32, %c0_i32_0 : i32, i32
  }
  func.func @transform_9(%arg0: i32, %arg1: i32) -> (i32, i32) {
    %c0_i32 = arith.constant 0 : i32
    %c0_i32_0 = arith.constant 0 : i32
    %c0_i32_1 = arith.constant 0 : i32
    return %c0_i32, %c0_i32_0 : i32, i32
  }
  func.func @transform_10(%arg0: i32, %arg1: i32) -> (i32, i32) {
    %c0_i32 = arith.constant 0 : i32
    %c0_i32_0 = arith.constant 0 : i32
    %c0_i32_1 = arith.constant 0 : i32
    return %c0_i32, %c0_i32_0 : i32, i32
  }
  func.func @transform_11(%arg0: i32, %arg1: i32) -> (i32, i32, i32) {
    %c0_i32 = arith.constant 0 : i32
    %c0_i32_0 = arith.constant 0 : i32
    return %arg0, %c0_i32, %arg1 : i32, i32, i32
  }
  func.func @transform_12(%arg0: i32, %arg1: i32) -> (i32, i32, i32) {
    %c0_i32 = arith.constant 0 : i32
    %c0_i32_0 = arith.constant 0 : i32
    return %arg0, %c0_i32, %arg1 : i32, i32, i32
  }
}

</mosaic_0001>

<llo_original>
// kernel: _lambda_.1
$region0: #{_lambda_.1}
  #allocation0 [shape = 'u32[]', space=smem, size = 0x4, offset = 0x4, fixed_abs, tag = 'smem constant byte address 0x4 - core index']
  #allocation1 [shape = 'u32[144,128]{1,0:T(1,128)}', space=vmem, size = 0x12000, scoped, tag = 'internal scratch']
  %s0 = inlined_call_operand.vmem [shape: f32[2,16,256], index: 0, kind: input, shape index: {}]
  %s1 = inlined_call_operand.vmem [shape: f32[2,1,16], index: 1, kind: input, shape index: {}]
  %s2 = inlined_call_operand.vmem [shape: f32[2,16,1], index: 2, kind: input, shape index: {}]
  %s3 = inlined_call_operand.vmem [shape: f32[2,1,16], index: 3, kind: input, shape index: {}]
  %s4 = inlined_call_operand.vmem [shape: f32[2,32,1], index: 4, kind: input, shape index: {}]
  %s5 = inlined_call_operand.vmem [shape: f32[16,16], index: 5, kind: input, shape index: {}]
  %s6 = inlined_call_operand.vmem [shape: f32[16,1], index: 6, kind: input, shape index: {}]
  %s7 = inlined_call_operand.vmem [shape: f32[32,16], index: 7, kind: input, shape index: {}]
  %s8 = inlined_call_operand.vmem [shape: f32[32,1], index: 8, kind: input, shape index: {}]
  %s9 = inlined_call_operand.vmem [shape: f32[8,32], index: 9, kind: input, shape index: {}]
  %s10 = inlined_call_operand.vmem [shape: f32[8,1], index: 10, kind: input, shape index: {}]
  %s11 = inlined_call_operand.vmem [shape: f32[2,32,256], index: 11, kind: output, shape index: {0}]
  %s12 = inlined_call_operand.vmem [shape: f32[2,3,256], index: 12, kind: output, shape index: {1}]
  %13 = xla_tuple %s11, %s12
  %s14 = sld [smem:[#allocation0]]
  $region85: #{_lambda_.1} parent=0
    _
  %s16 = ssub.s32 1, %s14
  %s17 = scalar_select 0, %s16, %s14
  loop: start=0, step=1, limit=4
  $region2: #{_lambda_.1} parent=0 // loop_pre_header
    _
  $region3: #{_lambda_.1} parent=0 // loop_header
    %s19 = sphi 0, %s23
    %p20 = scmp.ge.s32.totalorder %s19, 4
    %s26 = sphi 0, %s38
    %s27 = sphi 0, %s34
    %s28 = sphi 0, %s26
    %s29 = sphi 0, %s27
    %s30 = sphi 0, %s28
    %s31 = sphi 0, %s29
    %s43 = sphi 0, %s45
    %s46 = sphi 0, %s43
    %s47 = sphi 0, %s46
    %s63 = sphi 0, %s47
    %s69 = sphi 0, %s71
    %s72 = sphi 0, %s69
    %s73 = sphi 0, %s72
    %s89 = sphi 0, %s73
    %s95 = sphi 0, %s97
    %s98 = sphi 0, %s95
    %s99 = sphi 0, %s98
    %s115 = sphi 0, %s99
    %s121 = sphi 0, %s123
    %s124 = sphi 0, %s121
    %s125 = sphi 0, %s124
    %s141 = sphi 0, %s125
    %s147 = sphi 0, %s149
    %s150 = sphi 0, %s147
    %s151 = sphi 0, %s150
    %s167 = sphi 0, %s151
    %s171 = sphi 0, %s171
    %s173 = sphi 0, %s171
    %s174 = sphi 0, %s173
    %s188 = sphi 0, %s174
    %s192 = sphi 0, %s192
    %s194 = sphi 0, %s192
    %s195 = sphi 0, %s194
    %s209 = sphi 0, %s195
    %s213 = sphi 0, %s213
    %s215 = sphi 0, %s213
    %s216 = sphi 0, %s215
    %s230 = sphi 0, %s216
    %s234 = sphi 0, %s234
    %s236 = sphi 0, %s234
    %s237 = sphi 0, %s236
    %s251 = sphi 0, %s237
    %s255 = sphi 0, %s255
    %s257 = sphi 0, %s255
    %s258 = sphi 0, %s257
    %s272 = sphi 0, %s258
    %s276 = sphi 0, %s276
    %s278 = sphi 0, %s276
    %s279 = sphi 0, %s278
    %s293 = sphi 0, %s279
    %s301 = sphi 0, %s303
    %s304 = sphi 0, %s301
    %s305 = sphi 0, %s304
    %s321 = sphi 0, %s305
    %s329 = sphi 0, %s331
    %s332 = sphi 0, %s329
    %s333 = sphi 0, %s332
    %s349 = sphi 0, %s333
  $region4: #{_lambda_.1} parent=0 // loop_header_branch
    %22 = sbr.rel (%p20) target = $region8
  $region5: #{_lambda_.1} parent=0 // loop_body
    %s24 = ssub.s32 %s19, 1
    %s25 = ssub.s32 %s19, 2
    %s32 = sadd.s32 1, %s27
    %p33 = scmp.ge.s32.totalorder %s32, 1
    %s34 = scalar_select %p33, 0, %s32
    %s35 = sadd.s32 1, %s26
    %s36 = scalar_select %p33, %s35, %s26
    %p37 = scmp.ge.s32.totalorder %s36, 2
    %s38 = scalar_select %p37, 0, %s36
    %s39 = ssub.s32 %s26, %s38
    %s40 = ssub.s32 %s27, %s34
    %s41 = sor.u32 %s39, %s40
    %p42 = scmp.eq.s32.totalorder %s41, 0
    %s44 = sadd.s32 %s43, 1
    %s45 = scalar_select %p42, %s43, %s44
    %p48 = pneg %p42
    %p49 = scmp.eq.s32.totalorder %s19, 1
    %p50 = por %p48, %p49
    %p51 = scmp.ne.s32.totalorder %s43, %s46
    %p52 = scmp.eq.s32.totalorder %s19, 0
    %p53 = por %p51, %p52
    %p54 = scmp.ne.s32.totalorder %s43, %s46
    %p55 = scmp.eq.s32.totalorder %s24, 1
    %p56 = por %p54, %p55
    %p57 = scmp.ne.s32.totalorder %s46, %s47
    %p58 = scmp.eq.s32.totalorder %s24, 0
    %p59 = por %p57, %p58
    %p60 = scmp.ne.s32.totalorder %s46, %s47
    %p61 = scmp.eq.s32.totalorder %s25, 1
    %p62 = por %p60, %p61
    %p64 = scmp.ne.s32.totalorder %s47, %s63
    %p65 = scmp.eq.s32.totalorder %s25, 0
    %p66 = por %p64, %p65
    %s67 = ssub.s32 %s26, %s38
    %p68 = scmp.eq.s32.totalorder %s67, 0
    %s70 = sadd.s32 %s69, 1
    %s71 = scalar_select %p68, %s69, %s70
    %p74 = pneg %p68
    %p75 = scmp.eq.s32.totalorder %s19, 1
    %p76 = por %p74, %p75
    %p77 = scmp.ne.s32.totalorder %s69, %s72
    %p78 = scmp.eq.s32.totalorder %s19, 0
    %p79 = por %p77, %p78
    %p80 = scmp.ne.s32.totalorder %s69, %s72
    %p81 = scmp.eq.s32.totalorder %s24, 1
    %p82 = por %p80, %p81
    %p83 = scmp.ne.s32.totalorder %s72, %s73
    %p84 = scmp.eq.s32.totalorder %s24, 0
    %p85 = por %p83, %p84
    %p86 = scmp.ne.s32.totalorder %s72, %s73
    %p87 = scmp.eq.s32.totalorder %s25, 1
    %p88 = por %p86, %p87
    %p90 = scmp.ne.s32.totalorder %s73, %s89
    %p91 = scmp.eq.s32.totalorder %s25, 0
    %p92 = por %p90, %p91
    %s93 = ssub.s32 %s26, %s38
    %p94 = scmp.eq.s32.totalorder %s93, 0
    %s96 = sadd.s32 %s95, 1
    %s97 = scalar_select %p94, %s95, %s96
    %p100 = pneg %p94
    %p101 = scmp.eq.s32.totalorder %s19, 1
    %p102 = por %p100, %p101
    %p103 = scmp.ne.s32.totalorder %s95, %s98
    %p104 = scmp.eq.s32.totalorder %s19, 0
    %p105 = por %p103, %p104
    %p106 = scmp.ne.s32.totalorder %s95, %s98
    %p107 = scmp.eq.s32.totalorder %s24, 1
    %p108 = por %p106, %p107
    %p109 = scmp.ne.s32.totalorder %s98, %s99
    %p110 = scmp.eq.s32.totalorder %s24, 0
    %p111 = por %p109, %p110
    %p112 = scmp.ne.s32.totalorder %s98, %s99
    %p113 = scmp.eq.s32.totalorder %s25, 1
    %p114 = por %p112, %p113
    %p116 = scmp.ne.s32.totalorder %s99, %s115
    %p117 = scmp.eq.s32.totalorder %s25, 0
    %p118 = por %p116, %p117
    %s119 = ssub.s32 %s26, %s38
    %p120 = scmp.eq.s32.totalorder %s119, 0
    %s122 = sadd.s32 %s121, 1
    %s123 = scalar_select %p120, %s121, %s122
    %p126 = pneg %p120
    %p127 = scmp.eq.s32.totalorder %s19, 1
    %p128 = por %p126, %p127
    %p129 = scmp.ne.s32.totalorder %s121, %s124
    %p130 = scmp.eq.s32.totalorder %s19, 0
    %p131 = por %p129, %p130
    %p132 = scmp.ne.s32.totalorder %s121, %s124
    %p133 = scmp.eq.s32.totalorder %s24, 1
    %p134 = por %p132, %p133
    %p135 = scmp.ne.s32.totalorder %s124, %s125
    %p136 = scmp.eq.s32.totalorder %s24, 0
    %p137 = por %p135, %p136
    %p138 = scmp.ne.s32.totalorder %s124, %s125
    %p139 = scmp.eq.s32.totalorder %s25, 1
    %p140 = por %p138, %p139
    %p142 = scmp.ne.s32.totalorder %s125, %s141
    %p143 = scmp.eq.s32.totalorder %s25, 0
    %p144 = por %p142, %p143
    %s145 = ssub.s32 %s26, %s38
    %p146 = scmp.eq.s32.totalorder %s145, 0
    %s148 = sadd.s32 %s147, 1
    %s149 = scalar_select %p146, %s147, %s148
    %p152 = pneg %p146
    %p153 = scmp.eq.s32.totalorder %s19, 1
    %p154 = por %p152, %p153
    %p155 = scmp.ne.s32.totalorder %s147, %s150
    %p156 = scmp.eq.s32.totalorder %s19, 0
    %p157 = por %p155, %p156
    %p158 = scmp.ne.s32.totalorder %s147, %s150
    %p159 = scmp.eq.s32.totalorder %s24, 1
    %p160 = por %p158, %p159
    %p161 = scmp.ne.s32.totalorder %s150, %s151
    %p162 = scmp.eq.s32.totalorder %s24, 0
    %p163 = por %p161, %p162
    %p164 = scmp.ne.s32.totalorder %s150, %s151
    %p165 = scmp.eq.s32.totalorder %s25, 1
    %p166 = por %p164, %p165
    %p168 = scmp.ne.s32.totalorder %s151, %s167
    %p169 = scmp.eq.s32.totalorder %s25, 0
    %p170 = por %p168, %p169
    %s172 = sadd.s32 %s171, 1
    %p175 = scmp.eq.s32.totalorder %s19, 1
    %p176 = scmp.ne.s32.totalorder %s171, %s173
    %p177 = scmp.eq.s32.totalorder %s19, 0
    %p178 = por %p176, %p177
    %p179 = scmp.ne.s32.totalorder %s171, %s173
    %p180 = scmp.eq.s32.totalorder %s24, 1
    %p181 = por %p179, %p180
    %p182 = scmp.ne.s32.totalorder %s173, %s174
    %p183 = scmp.eq.s32.totalorder %s24, 0
    %p184 = por %p182, %p183
    %p185 = scmp.ne.s32.totalorder %s173, %s174
    %p186 = scmp.eq.s32.totalorder %s25, 1
    %p187 = por %p185, %p186
    %p189 = scmp.ne.s32.totalorder %s174, %s188
    %p190 = scmp.eq.s32.totalorder %s25, 0
    %p191 = por %p189, %p190
    %s193 = sadd.s32 %s192, 1
    %p196 = scmp.eq.s32.totalorder %s19, 1
    %p197 = scmp.ne.s32.totalorder %s192, %s194
    %p198 = scmp.eq.s32.totalorder %s19, 0
    %p199 = por %p197, %p198
    %p200 = scmp.ne.s32.totalorder %s192, %s194
    %p201 = scmp.eq.s32.totalorder %s24, 1
    %p202 = por %p200, %p201
    %p203 = scmp.ne.s32.totalorder %s194, %s195
    %p204 = scmp.eq.s32.totalorder %s24, 0
    %p205 = por %p203, %p204
    %p206 = scmp.ne.s32.totalorder %s194, %s195
    %p207 = scmp.eq.s32.totalorder %s25, 1
    %p208 = por %p206, %p207
    %p210 = scmp.ne.s32.totalorder %s195, %s209
    %p211 = scmp.eq.s32.totalorder %s25, 0
    %p212 = por %p210, %p211
    %s214 = sadd.s32 %s213, 1
    %p217 = scmp.eq.s32.totalorder %s19, 1
    %p218 = scmp.ne.s32.totalorder %s213, %s215
    %p219 = scmp.eq.s32.totalorder %s19, 0
    %p220 = por %p218, %p219
    %p221 = scmp.ne.s32.totalorder %s213, %s215
    %p222 = scmp.eq.s32.totalorder %s24, 1
    %p223 = por %p221, %p222
    %p224 = scmp.ne.s32.totalorder %s215, %s216
    %p225 = scmp.eq.s32.totalorder %s24, 0
    %p226 = por %p224, %p225
    %p227 = scmp.ne.s32.totalorder %s215, %s216
    %p228 = scmp.eq.s32.totalorder %s25, 1
    %p229 = por %p227, %p228
    %p231 = scmp.ne.s32.totalorder %s216, %s230
    %p232 = scmp.eq.s32.totalorder %s25, 0
    %p233 = por %p231, %p232
    %s235 = sadd.s32 %s234, 1
    %p238 = scmp.eq.s32.totalorder %s19, 1
    %p239 = scmp.ne.s32.totalorder %s234, %s236
    %p240 = scmp.eq.s32.totalorder %s19, 0
    %p241 = por %p239, %p240
    %p242 = scmp.ne.s32.totalorder %s234, %s236
    %p243 = scmp.eq.s32.totalorder %s24, 1
    %p244 = por %p242, %p243
    %p245 = scmp.ne.s32.totalorder %s236, %s237
    %p246 = scmp.eq.s32.totalorder %s24, 0
    %p247 = por %p245, %p246
    %p248 = scmp.ne.s32.totalorder %s236, %s237
    %p249 = scmp.eq.s32.totalorder %s25, 1
    %p250 = por %p248, %p249
    %p252 = scmp.ne.s32.totalorder %s237, %s251
    %p253 = scmp.eq.s32.totalorder %s25, 0
    %p254 = por %p252, %p253
    %s256 = sadd.s32 %s255, 1
    %p259 = scmp.eq.s32.totalorder %s19, 1
    %p260 = scmp.ne.s32.totalorder %s255, %s257
    %p261 = scmp.eq.s32.totalorder %s19, 0
    %p262 = por %p260, %p261
    %p263 = scmp.ne.s32.totalorder %s255, %s257
    %p264 = scmp.eq.s32.totalorder %s24, 1
    %p265 = por %p263, %p264
    %p266 = scmp.ne.s32.totalorder %s257, %s258
    %p267 = scmp.eq.s32.totalorder %s24, 0
    %p268 = por %p266, %p267
    %p269 = scmp.ne.s32.totalorder %s257, %s258
    %p270 = scmp.eq.s32.totalorder %s25, 1
    %p271 = por %p269, %p270
    %p273 = scmp.ne.s32.totalorder %s258, %s272
    %p274 = scmp.eq.s32.totalorder %s25, 0
    %p275 = por %p273, %p274
    %s277 = sadd.s32 %s276, 1
    %p280 = scmp.eq.s32.totalorder %s19, 1
    %p281 = scmp.ne.s32.totalorder %s276, %s278
    %p282 = scmp.eq.s32.totalorder %s19, 0
    %p283 = por %p281, %p282
    %p284 = scmp.ne.s32.totalorder %s276, %s278
    %p285 = scmp.eq.s32.totalorder %s24, 1
    %p286 = por %p284, %p285
    %p287 = scmp.ne.s32.totalorder %s278, %s279
    %p288 = scmp.eq.s32.totalorder %s24, 0
    %p289 = por %p287, %p288
    %p290 = scmp.ne.s32.totalorder %s278, %s279
    %p291 = scmp.eq.s32.totalorder %s25, 1
    %p292 = por %p290, %p291
    %p294 = scmp.ne.s32.totalorder %s279, %s293
    %p295 = scmp.eq.s32.totalorder %s25, 0
    %p296 = por %p294, %p295
    %s297 = ssub.s32 %s26, %s38
    %s298 = ssub.s32 %s27, %s34
    %s299 = sor.u32 %s297, %s298
    %p300 = scmp.eq.s32.totalorder %s299, 0
    %s302 = sadd.s32 %s301, 1
    %s303 = scalar_select %p300, %s301, %s302
    %p306 = pneg %p300
    %p307 = scmp.eq.s32.totalorder %s19, 1
    %p308 = por %p306, %p307
    %p309 = scmp.ne.s32.totalorder %s301, %s304
    %p310 = scmp.eq.s32.totalorder %s19, 0
    %p311 = por %p309, %p310
    %p312 = scmp.ne.s32.totalorder %s301, %s304
    %p313 = scmp.eq.s32.totalorder %s24, 1
    %p314 = por %p312, %p313
    %p315 = scmp.ne.s32.totalorder %s304, %s305
    %p316 = scmp.eq.s32.totalorder %s24, 0
    %p317 = por %p315, %p316
    %p318 = scmp.ne.s32.totalorder %s304, %s305
    %p319 = scmp.eq.s32.totalorder %s25, 1
    %p320 = por %p318, %p319
    %p322 = scmp.ne.s32.totalorder %s305, %s321
    %p323 = scmp.eq.s32.totalorder %s25, 0
    %p324 = por %p322, %p323
    %s325 = ssub.s32 %s26, %s38
    %s326 = ssub.s32 %s27, %s34
    %s327 = sor.u32 %s325, %s326
    %p328 = scmp.eq.s32.totalorder %s327, 0
    %s330 = sadd.s32 %s329, 1
    %s331 = scalar_select %p328, %s329, %s330
    %p334 = pneg %p328
    %p335 = scmp.eq.s32.totalorder %s19, 1
    %p336 = por %p334, %p335
    %p337 = scmp.ne.s32.totalorder %s329, %s332
    %p338 = scmp.eq.s32.totalorder %s19, 0
    %p339 = por %p337, %p338
    %p340 = scmp.ne.s32.totalorder %s329, %s332
    %p341 = scmp.eq.s32.totalorder %s24, 1
    %p342 = por %p340, %p341
    %p343 = scmp.ne.s32.totalorder %s332, %s333
    %p344 = scmp.eq.s32.totalorder %s24, 0
    %p345 = por %p343, %p344
    %p346 = scmp.ne.s32.totalorder %s332, %s333
    %p347 = scmp.eq.s32.totalorder %s25, 1
    %p348 = por %p346, %p347
    %p350 = scmp.ne.s32.totalorder %s333, %s349
    %p351 = scmp.eq.s32.totalorder %s25, 0
    %p352 = por %p350, %p351
    %p353 = scmp.le.s32.totalorder 1, %s19
    %p354 = scmp.lt.s32.totalorder %s19, 3
    %p355 = pnand %p353, %p354
    %p356 = pneg %p355
    // Predicated region
    $region9: #{_lambda_.1} parent=5 // pred_check
      _
    $region10: #{_lambda_.1} parent=5 // pred_check_branch
      %358 = sbr.rel (%p355) target = $region12
    $region11: #{_lambda_.1} parent=5 // pred_region
      %s359 = ssub.s32 %s19, 1
      // Predicated region
      $region13: #{_lambda_.1} parent=11 // pred_check
        %p360 = pneg %p184
      $region14: #{_lambda_.1} parent=11 // pred_check_branch
        %362 = sbr.rel (%p360) target = $region16
      $region15: #{_lambda_.1} parent=11 // pred_region
        _
      $region16: #{_lambda_.1} parent=11 // pred_fallthru
        _
      // Predicated region
      $region17: #{_lambda_.1} parent=11 // pred_check
        %p363 = pneg %p205
      $region18: #{_lambda_.1} parent=11 // pred_check_branch
        %365 = sbr.rel (%p363) target = $region20
      $region19: #{_lambda_.1} parent=11 // pred_region
        _
      $region20: #{_lambda_.1} parent=11 // pred_fallthru
        _
      // Predicated region
      $region21: #{_lambda_.1} parent=11 // pred_check
        %p366 = pneg %p226
      $region22: #{_lambda_.1} parent=11 // pred_check_branch
        %368 = sbr.rel (%p366) target = $region24
      $region23: #{_lambda_.1} parent=11 // pred_region
        _
      $region24: #{_lambda_.1} parent=11 // pred_fallthru
        _
      // Predicated region
      $region25: #{_lambda_.1} parent=11 // pred_check
        %p369 = pneg %p247
      $region26: #{_lambda_.1} parent=11 // pred_check_branch
        %371 = sbr.rel (%p369) target = $region28
      $region27: #{_lambda_.1} parent=11 // pred_region
        _
      $region28: #{_lambda_.1} parent=11 // pred_fallthru
        _
      // Predicated region
      $region29: #{_lambda_.1} parent=11 // pred_check
        %p372 = pneg %p268
      $region30: #{_lambda_.1} parent=11 // pred_check_branch
        %374 = sbr.rel (%p372) target = $region32
      $region31: #{_lambda_.1} parent=11 // pred_region
        _
      $region32: #{_lambda_.1} parent=11 // pred_fallthru
        _
      // Predicated region
      $region33: #{_lambda_.1} parent=11 // pred_check
        %p375 = pneg %p289
      $region34: #{_lambda_.1} parent=11 // pred_check_branch
        %377 = sbr.rel (%p375) target = $region36
      $region35: #{_lambda_.1} parent=11 // pred_region
        _
      $region36: #{_lambda_.1} parent=11 // pred_fallthru
        _
    $region12: #{_lambda_.1} parent=5 // pred_fallthru
      _
    %p378 = scmp.lt.s32.totalorder %s19, 2
    // Predicated region
    $region37: #{_lambda_.1} parent=5 // pred_check
      %p379 = pneg %p378
    $region38: #{_lambda_.1} parent=5 // pred_check_branch
      %381 = sbr.rel (%p379) target = $region40
    $region39: #{_lambda_.1} parent=5 // pred_region
      // Predicated region
      $region41: #{_lambda_.1} parent=39 // pred_check
        %p382 = pneg %p53
      $region42: #{_lambda_.1} parent=39 // pred_check_branch
        %384 = sbr.rel (%p382) target = $region44
      $region43: #{_lambda_.1} parent=39 // pred_region
        %s385 = smul.u32 2, %s27
        %p386 = scmp.lt.s32.totalorder %s26, 1
        %s387 = scalar_select %p386, %s26, 1
        %p388 = scmp.lt.s32.totalorder %s385, 1
        %s389 = scalar_select %p388, %s385, 1
        %s390 = smul.addr %s387, 4
        %s391 = sadd.s32 %s389, %s390
        %s392 = smul.addr %s391, 8
        %s393 = scalar_lea.vmem %s0, %s392
        %s394 = smul.u32 2, %s27
      $region44: #{_lambda_.1} parent=39 // pred_fallthru
        _
      // Predicated region
      $region45: #{_lambda_.1} parent=39 // pred_check
        %p395 = pneg %p79
      $region46: #{_lambda_.1} parent=39 // pred_check_branch
        %397 = sbr.rel (%p395) target = $region48
      $region47: #{_lambda_.1} parent=39 // pred_region
        %p398 = scmp.lt.s32.totalorder %s26, 1
        %s399 = scalar_select %p398, %s26, 1
        %s400 = scalar_lea.vmem %s1, %s399
      $region48: #{_lambda_.1} parent=39 // pred_fallthru
        _
      // Predicated region
      $region49: #{_lambda_.1} parent=39 // pred_check
        %p401 = pneg %p105
      $region50: #{_lambda_.1} parent=39 // pred_check_branch
        %403 = sbr.rel (%p401) target = $region52
      $region51: #{_lambda_.1} parent=39 // pred_region
        %p404 = scmp.lt.s32.totalorder %s26, 1
        %s405 = scalar_select %p404, %s26, 1
        %s406 = smul.addr %s405, 2
        %s407 = smul.addr %s406, 8
        %s408 = scalar_lea.vmem %s2, %s407
      $region52: #{_lambda_.1} parent=39 // pred_fallthru
        _
      // Predicated region
      $region53: #{_lambda_.1} parent=39 // pred_check
        %p409 = pneg %p131
      $region54: #{_lambda_.1} parent=39 // pred_check_branch
        %411 = sbr.rel (%p409) target = $region56
      $region55: #{_lambda_.1} parent=39 // pred_region
        %p412 = scmp.lt.s32.totalorder %s26, 1
        %s413 = scalar_select %p412, %s26, 1
        %s414 = scalar_lea.vmem %s3, %s413
      $region56: #{_lambda_.1} parent=39 // pred_fallthru
        _
      // Predicated region
      $region57: #{_lambda_.1} parent=39 // pred_check
        %p415 = pneg %p157
      $region58: #{_lambda_.1} parent=39 // pred_check_branch
        %417 = sbr.rel (%p415) target = $region60
      $region59: #{_lambda_.1} parent=39 // pred_region
        %p418 = scmp.lt.s32.totalorder %s26, 1
        %s419 = scalar_select %p418, %s26, 1
        %s420 = smul.addr %s419, 4
        %s421 = smul.addr %s420, 8
        %s422 = scalar_lea.vmem %s4, %s421
      $region60: #{_lambda_.1} parent=39 // pred_fallthru
        _
    $region40: #{_lambda_.1} parent=5 // pred_fallthru
      _
    %p423 = scmp.le.s32.totalorder 1, %s19
    %p424 = scmp.lt.s32.totalorder %s19, 3
    %p425 = pnand %p423, %p424
    %p426 = pneg %p425
    // Predicated region
    $region61: #{_lambda_.1} parent=5 // pred_check
      _
    $region62: #{_lambda_.1} parent=5 // pred_check_branch
      %428 = sbr.rel (%p425) target = $region64
    $region63: #{_lambda_.1} parent=5 // pred_region
      %s429 = ssub.s32 %s19, 1
      %s430 = smul.u32 2, %s29
      %p431 = scmp.lt.s32.totalorder %s28, 1
      %s432 = scalar_select %p431, %s28, 1
      %p433 = scmp.lt.s32.totalorder %s430, 1
      %s434 = scalar_select %p433, %s430, 1
      %s435 = smul.addr %s432, 4
      %s436 = sadd.s32 %s434, %s435
      %s437 = smul.addr %s436, 8
      %s438 = scalar_lea.vmem %s0, %s437
      %p439 = pneg %p59
      %p440 = pneg %p56
      %p441 = scmp.lt.s32.totalorder %s28, 1
      %s442 = scalar_select %p441, %s28, 1
      %s443 = scalar_lea.vmem %s1, %s442
      %p444 = pneg %p85
      %p445 = pneg %p82
      %p446 = scmp.lt.s32.totalorder %s28, 1
      %s447 = scalar_select %p446, %s28, 1
      %s448 = smul.addr %s447, 2
      %s449 = smul.addr %s448, 8
      %s450 = scalar_lea.vmem %s2, %s449
      %p451 = pneg %p111
      %p452 = pneg %p108
      %p453 = scmp.lt.s32.totalorder %s28, 1
      %s454 = scalar_select %p453, %s28, 1
      %s455 = scalar_lea.vmem %s3, %s454
      %p456 = pneg %p137
      %p457 = pneg %p134
      %p458 = scmp.lt.s32.totalorder %s28, 1
      %s459 = scalar_select %p458, %s28, 1
      %s460 = smul.addr %s459, 4
      %s461 = smul.addr %s460, 8
      %s462 = scalar_lea.vmem %s4, %s461
      %p463 = pneg %p163
      %p464 = pneg %p160
      %p465 = pneg %p184
      %p466 = pneg %p181
      %p467 = pneg %p205
      %p468 = pneg %p202
      %p469 = pneg %p226
      %p470 = pneg %p223
      %p471 = pneg %p247
      %p472 = pneg %p244
      %p473 = pneg %p268
      %p474 = pneg %p265
      %p475 = pneg %p289
      %p476 = pneg %p286
      %p477 = pneg %p317
      %p478 = pneg %p314
      %s479 = smul.u32 2, %s29
      %p480 = scmp.lt.s32.totalorder %s28, 1
      %s481 = scalar_select %p480, %s28, 1
      %p482 = scmp.lt.s32.totalorder %s479, 1
      %s483 = scalar_select %p482, %s479, 1
      %s484 = smul.addr %s481, 8
      %s485 = sadd.s32 %s483, %s484
      %s486 = smul.addr %s485, 8
      %s487 = scalar_lea.vmem %s11, %s486
      %p488 = pneg %p345
      %p489 = pneg %p342
      %s490 = smul.u32 2, %s29
      %p491 = scmp.lt.s32.totalorder %s28, 1
      %s492 = scalar_select %p491, %s28, 1
      %p493 = scmp.lt.s32.totalorder %s490, 1
      %s494 = scalar_select %p493, %s490, 1
      %s495 = smul.addr %s492, 2
      %s496 = sadd.s32 %s494, %s495
      %s497 = smul.addr %s496, 4
      %s498 = scalar_lea.vmem %s12, %s497
      %s499 = smul.u32 2, %s29
      %p500 = scmp.lt.s32.totalorder %s28, 1
      %s501 = scalar_select %p500, %s28, 1
      %p502 = scmp.lt.s32.totalorder %s499, 1
      %s503 = scalar_select %p502, %s499, 1
      %s504 = smul.addr %s501, 4
      %s505 = sadd.s32 %s503, %s504
      %s506 = smul.addr %s505, 8
      %s507 = scalar_lea.vmem %s0, %s506
      %s508 = smul.u32 2, %s29
      %p509 = scmp.lt.s32.totalorder %s28, 1
      %s510 = scalar_select %p509, %s28, 1
      %s511 = scalar_lea.vmem %s1, %s510
      %p512 = scmp.lt.s32.totalorder %s28, 1
      %s513 = scalar_select %p512, %s28, 1
      %s514 = smul.addr %s513, 2
      %s515 = smul.addr %s514, 8
      %s516 = scalar_lea.vmem %s2, %s515
      %p517 = scmp.lt.s32.totalorder %s28, 1
      %s518 = scalar_select %p517, %s28, 1
      %s519 = scalar_lea.vmem %s3, %s518
      %p520 = scmp.lt.s32.totalorder %s28, 1
      %s521 = scalar_select %p520, %s28, 1
      %s522 = smul.addr %s521, 4
      %s523 = smul.addr %s522, 8
      %s524 = scalar_lea.vmem %s4, %s523
      %s525 = smul.u32 2, %s29
      %p526 = scmp.lt.s32.totalorder %s28, 1
      %s527 = scalar_select %p526, %s28, 1
      %p528 = scmp.lt.s32.totalorder %s525, 1
      %s529 = scalar_select %p528, %s525, 1
      %s530 = smul.addr %s527, 8
      %s531 = sadd.s32 %s529, %s530
      %s532 = smul.addr %s531, 8
      %s533 = scalar_lea.vmem %s11, %s532
      %s534 = smul.u32 2, %s29
      %s535 = smul.u32 2, %s29
      %p536 = scmp.lt.s32.totalorder %s28, 1
      %s537 = scalar_select %p536, %s28, 1
      %p538 = scmp.lt.s32.totalorder %s535, 1
      %s539 = scalar_select %p538, %s535, 1
      %s540 = smul.addr %s537, 2
      %s541 = sadd.s32 %s539, %s540
      %s542 = smul.addr %s541, 4
      %s543 = scalar_lea.vmem %s12, %s542
      %s544 = smul.u32 2, %s29
      %v545 = vld [vmem:[%s507] sm:$0xff]
      %v546 = vld [vmem:[%s507 + $0x8] sm:$0xff]
      %v547 = vld [vmem:[%s507 + $0x10] sm:$0xff]
      %v548 = vld [vmem:[%s507 + $0x18] sm:$0xff]
      %v549 = vld [vmem:[%s5] sm:$0xff]
      %v550 = vld [vmem:[%s5 + $0x8] sm:$0xff]
      %v551 = vld [vmem:[%s511] sm:$0x1]
      %v553 = vlaneseq
      %v554 = vshrl.u32 %v553, 7
      %v555 = vsub.s32 0, %v554
      %v556 = vrot.slane %v551, %v555
      %v558 = vmul.f32 %v549, %v556
      %v559 = vmul.f32 %v550, %v556
      %v560 = vld [vmem:[%s516] sm:$0xff]
      %v561 = vld [vmem:[%s516 + $0x8] sm:$0xff]
      %563 = vset.pattern.permute.xlu0 0
      %564 = vperm.xlu0 %563, %v560
      %v565 = vpop.permute.xlu0 %564
      %568 = vset.pattern.permute.xlu0 0
      %569 = vperm.xlu0 %568, %v561
      %v570 = vpop.permute.xlu0 %569
      %v572 = vmul.f32 %v558, %v565
      %v573 = vmul.f32 %v559, %v570
      %v574 = vld [vmem:[%s6] sm:$0xff]
      %v575 = vld [vmem:[%s6 + $0x8] sm:$0xff]
      %577 = vset.pattern.permute.xlu0 0
      %578 = vperm.xlu0 %577, %v574
      %v579 = vpop.permute.xlu0 %578
      %582 = vset.pattern.permute.xlu0 0
      %583 = vperm.xlu0 %582, %v575
      %v584 = vpop.permute.xlu0 %583
      %vm586 = vcmask 130048
      %v588 = vsel %vm586, %v572, 0
      %v591 = vsel %vm586, %v573, 0
      %593 = vmatprep.subr.mxu0 0.0
      %594 = vmatpush1.msra.mxu0 0.0
      %595 = vmatprep.subr.mxu0 0.0
      %596 = vmatpush1.msra.mxu0 0.0
      %597 = vmatprep.subr.mxu0 0.0
      %598 = vmatpush1.msra.mxu0 0.0
      %599 = vmatprep.subr.mxu0 0.0
      %600 = vmatpush1.msra.mxu0 0.0
      %601 = vmatprep.subr.mxu0 0.0
      %602 = vmatpush1.msra.mxu0 0.0
      %603 = vmatprep.subr.mxu0 0.0
      %604 = vmatpush1.msra.mxu0 0.0
      %605 = vmatprep.subr.mxu0 0.0
      %606 = vmatpush1.msra.mxu0 0.0
      %607 = vmatprep.subr.mxu0 0.0
      %608 = vmatpush1.msra.mxu0 0.0
      %609 = vmatprep.subr.mxu0 0.0
      %610 = vmatpush1.msra.mxu0 0.0
      %611 = vmatprep.subr.mxu0 0.0
      %612 = vmatpush1.msra.mxu0 0.0
      %613 = vmatprep.subr.mxu0 0.0
      %614 = vmatpush1.msra.mxu0 0.0
      %615 = vmatprep.subr.mxu0 0.0
      %616 = vmatpush1.msra.mxu0 0.0
      %617 = vmatprep.subr.mxu0 0.0
      %618 = vmatpush1.msra.mxu0 0.0
      %619 = vmatprep.subr.mxu0 0.0
      %620 = vmatpush1.msra.mxu0 0.0
      %621 = vmatprep.subr.mxu0 %v548
      %622 = vmatpush1.msra.mxu0 %v547
      %623 = vmatprep.subr.mxu0 %v546
      %624 = vmatpush1.msra.mxu0 %v545
      %625 = vmatprep.subr.mxu0 0.0
      %626 = vmatpush2.msra.mxu0 0.0
      %627 = vmatprep.subr.mxu0 0.0
      %628 = vmatpush2.msra.mxu0 0.0
      %629 = vmatprep.subr.mxu0 0.0
      %630 = vmatpush2.msra.mxu0 0.0
      %631 = vmatprep.subr.mxu0 0.0
      %632 = vmatpush2.msra.mxu0 0.0
      %633 = vmatprep.subr.mxu0 0.0
      %634 = vmatpush2.msra.mxu0 0.0
      %635 = vmatprep.subr.mxu0 0.0
      %636 = vmatpush2.msra.mxu0 0.0
      %637 = vmatprep.subr.mxu0 0.0
      %638 = vmatpush2.msra.mxu0 0.0
      %639 = vmatprep.subr.mxu0 0.0
      %640 = vmatpush2.msra.mxu0 0.0
      %641 = vmatprep.subr.mxu0 0.0
      %642 = vmatpush2.msra.mxu0 0.0
      %643 = vmatprep.subr.mxu0 0.0
      %644 = vmatpush2.msra.mxu0 0.0
      %645 = vmatprep.subr.mxu0 0.0
      %646 = vmatpush2.msra.mxu0 0.0
      %647 = vmatprep.subr.mxu0 0.0
      %648 = vmatpush2.msra.mxu0 0.0
      %649 = vmatprep.subr.mxu0 0.0
      %650 = vmatpush2.msra.mxu0 0.0
      %651 = vmatprep.subr.mxu0 0.0
      %652 = vmatpush2.msra.mxu0 0.0
      %653 = vmatprep.subr.mxu0 0.0
      %654 = vmatpush2.msra.mxu0 0.0
      %655 = vmatprep.subr.mxu0 0.0
      %656 = vmatpush2.msra.mxu0 0.0
      %657 = vmatprep.mubr.f32.mxu0 0.0
      %658 = vmatmul.mubr.f32.gmra.mxu0 %v588
      %v659 = vpop.f32.mrf.mxu0
      %v660 = vadd.f32 %v579, %v659
      %v661 = vpop.f32.mrf.mxu0
      %v662 = vadd.f32 %v579, %v661
      %663 = vmatprep.mubr.f32.mxu0 0.0
      %664 = vmatmul.mubr.f32.gmra.mxu0 %v591
      %v665 = vpop.f32.mrf.mxu0
      %v666 = vadd.f32 %v584, %v665
      %v667 = vpop.f32.mrf.mxu0
      %v668 = vadd.f32 %v584, %v667
      %669 = vdwg.mxu0
      %v670 = vld [vmem:[%s7] sm:$0xff]
      %v671 = vld [vmem:[%s7 + $0x8] sm:$0xff]
      %v672 = vld [vmem:[%s7 + $0x10] sm:$0xff]
      %v673 = vld [vmem:[%s7 + $0x18] sm:$0xff]
      %v674 = vld [vmem:[%s519] sm:$0x1]
      %v676 = vlaneseq
      %v677 = vshrl.u32 %v676, 7
      %v678 = vsub.s32 0, %v677
      %v679 = vrot.slane %v674, %v678
      %v681 = vmul.f32 %v670, %v679
      %v682 = vmul.f32 %v671, %v679
      %v683 = vmul.f32 %v672, %v679
      %v684 = vmul.f32 %v673, %v679
      %v685 = vld [vmem:[%s524] sm:$0xff]
      %v686 = vld [vmem:[%s524 + $0x8] sm:$0xff]
      %v687 = vld [vmem:[%s524 + $0x10] sm:$0xff]
      %v688 = vld [vmem:[%s524 + $0x18] sm:$0xff]
      %690 = vset.pattern.permute.xlu0 0
      %691 = vperm.xlu0 %690, %v685
      %v692 = vpop.permute.xlu0 %691
      %695 = vset.pattern.permute.xlu0 0
      %696 = vperm.xlu0 %695, %v686
      %v697 = vpop.permute.xlu0 %696
      %700 = vset.pattern.permute.xlu0 0
      %701 = vperm.xlu0 %700, %v687
      %v702 = vpop.permute.xlu0 %701
      %705 = vset.pattern.permute.xlu0 0
      %706 = vperm.xlu0 %705, %v688
      %v707 = vpop.permute.xlu0 %706
      %v709 = vmul.f32 %v681, %v692
      %v710 = vmul.f32 %v682, %v697
      %v711 = vmul.f32 %v683, %v702
      %v712 = vmul.f32 %v684, %v707
      %v713 = vld [vmem:[%s8] sm:$0xff]
      %v714 = vld [vmem:[%s8 + $0x8] sm:$0xff]
      %v715 = vld [vmem:[%s8 + $0x10] sm:$0xff]
      %v716 = vld [vmem:[%s8 + $0x18] sm:$0xff]
      %718 = vset.pattern.permute.xlu0 0
      %719 = vperm.xlu0 %718, %v713
      %v720 = vpop.permute.xlu0 %719
      %723 = vset.pattern.permute.xlu0 0
      %724 = vperm.xlu0 %723, %v714
      %v725 = vpop.permute.xlu0 %724
      %728 = vset.pattern.permute.xlu0 0
      %729 = vperm.xlu0 %728, %v715
      %v730 = vpop.permute.xlu0 %729
      %733 = vset.pattern.permute.xlu0 0
      %734 = vperm.xlu0 %733, %v716
      %v735 = vpop.permute.xlu0 %734
      %v738 = vsel %vm586, %v709, 0
      %v741 = vsel %vm586, %v710, 0
      %v744 = vsel %vm586, %v711, 0
      %v747 = vsel %vm586, %v712, 0
      %749 = vmatprep.subr.mxu0 0.0
      %750 = vmatpush1.msra.mxu0 0.0
      %751 = vmatprep.subr.mxu0 0.0
      %752 = vmatpush1.msra.mxu0 0.0
      %753 = vmatprep.subr.mxu0 0.0
      %754 = vmatpush1.msra.mxu0 0.0
      %755 = vmatprep.subr.mxu0 0.0
      %756 = vmatpush1.msra.mxu0 0.0
      %757 = vmatprep.subr.mxu0 0.0
      %758 = vmatpush1.msra.mxu0 0.0
      %759 = vmatprep.subr.mxu0 0.0
      %760 = vmatpush1.msra.mxu0 0.0
      %761 = vmatprep.subr.mxu0 0.0
      %762 = vmatpush1.msra.mxu0 0.0
      %763 = vmatprep.subr.mxu0 0.0
      %764 = vmatpush1.msra.mxu0 0.0
      %765 = vmatprep.subr.mxu0 0.0
      %766 = vmatpush1.msra.mxu0 0.0
      %767 = vmatprep.subr.mxu0 0.0
      %768 = vmatpush1.msra.mxu0 0.0
      %769 = vmatprep.subr.mxu0 0.0
      %770 = vmatpush1.msra.mxu0 0.0
      %771 = vmatprep.subr.mxu0 0.0
      %772 = vmatpush1.msra.mxu0 0.0
      %773 = vmatprep.subr.mxu0 0.0
      %774 = vmatpush1.msra.mxu0 0.0
      %775 = vmatprep.subr.mxu0 0.0
      %776 = vmatpush1.msra.mxu0 0.0
      %777 = vmatprep.subr.mxu0 %v668
      %778 = vmatpush1.msra.mxu0 %v666
      %779 = vmatprep.subr.mxu0 %v662
      %780 = vmatpush1.msra.mxu0 %v660
      %781 = vmatprep.subr.mxu0 0.0
      %782 = vmatpush2.msra.mxu0 0.0
      %783 = vmatprep.subr.mxu0 0.0
      %784 = vmatpush2.msra.mxu0 0.0
      %785 = vmatprep.subr.mxu0 0.0
      %786 = vmatpush2.msra.mxu0 0.0
      %787 = vmatprep.subr.mxu0 0.0
      %788 = vmatpush2.msra.mxu0 0.0
      %789 = vmatprep.subr.mxu0 0.0
      %790 = vmatpush2.msra.mxu0 0.0
      %791 = vmatprep.subr.mxu0 0.0
      %792 = vmatpush2.msra.mxu0 0.0
      %793 = vmatprep.subr.mxu0 0.0
      %794 = vmatpush2.msra.mxu0 0.0
      %795 = vmatprep.subr.mxu0 0.0
      %796 = vmatpush2.msra.mxu0 0.0
      %797 = vmatprep.subr.mxu0 0.0
      %798 = vmatpush2.msra.mxu0 0.0
      %799 = vmatprep.subr.mxu0 0.0
      %800 = vmatpush2.msra.mxu0 0.0
      %801 = vmatprep.subr.mxu0 0.0
      %802 = vmatpush2.msra.mxu0 0.0
      %803 = vmatprep.subr.mxu0 0.0
      %804 = vmatpush2.msra.mxu0 0.0
      %805 = vmatprep.subr.mxu0 0.0
      %806 = vmatpush2.msra.mxu0 0.0
      %807 = vmatprep.subr.mxu0 0.0
      %808 = vmatpush2.msra.mxu0 0.0
      %809 = vmatprep.subr.mxu0 0.0
      %810 = vmatpush2.msra.mxu0 0.0
      %811 = vmatprep.subr.mxu0 0.0
      %812 = vmatpush2.msra.mxu0 0.0
      %813 = vmatprep.mubr.f32.mxu0 0.0
      %814 = vmatmul.mubr.f32.gmra.mxu0 %v738
      %v815 = vpop.f32.mrf.mxu0
      %v816 = vadd.f32 %v720, %v815
      %v817 = vpop.f32.mrf.mxu0
      %v818 = vadd.f32 %v720, %v817
      %819 = vmatprep.mubr.f32.mxu0 0.0
      %820 = vmatmul.mubr.f32.gmra.mxu0 %v741
      %v821 = vpop.f32.mrf.mxu0
      %v822 = vadd.f32 %v725, %v821
      %v823 = vpop.f32.mrf.mxu0
      %v824 = vadd.f32 %v725, %v823
      %825 = vmatprep.mubr.f32.mxu0 0.0
      %826 = vmatmul.mubr.f32.gmra.mxu0 %v744
      %v827 = vpop.f32.mrf.mxu0
      %v828 = vadd.f32 %v730, %v827
      %v829 = vpop.f32.mrf.mxu0
      %v830 = vadd.f32 %v730, %v829
      %831 = vmatprep.mubr.f32.mxu0 0.0
      %832 = vmatmul.mubr.f32.gmra.mxu0 %v747
      %v833 = vpop.f32.mrf.mxu0
      %v834 = vadd.f32 %v735, %v833
      %v835 = vpop.f32.mrf.mxu0
      %v836 = vadd.f32 %v735, %v835
      %837 = vdwg.mxu0
      %838 = vst [vmem:[%s533] sm:$0xff] %v816
      %839 = vst [vmem:[%s533 + $0x8] sm:$0xff] %v818
      %840 = vst [vmem:[%s533 + $0x10] sm:$0xff] %v822
      %841 = vst [vmem:[%s533 + $0x18] sm:$0xff] %v824
      %842 = vst [vmem:[%s533 + $0x20] sm:$0xff] %v828
      %843 = vst [vmem:[%s533 + $0x28] sm:$0xff] %v830
      %844 = vst [vmem:[%s533 + $0x30] sm:$0xff] %v834
      %845 = vst [vmem:[%s533 + $0x38] sm:$0xff] %v836
      %v846 = vld [vmem:[%s9] sm:$0xff]
      %v847 = vld [vmem:[%s10] sm:$0xff]
      %849 = vset.pattern.permute.xlu0 0
      %850 = vperm.xlu0 %849, %v847
      %v851 = vpop.permute.xlu0 %850
      %vm853 = vcmask 261120
      %v855 = vsel %vm853, %v846, 0
      %857 = vmatprep.subr.mxu0 0.0
      %858 = vmatpush1.msra.mxu0 0.0
      %859 = vmatprep.subr.mxu0 0.0
      %860 = vmatpush1.msra.mxu0 0.0
      %861 = vmatprep.subr.mxu0 0.0
      %862 = vmatpush1.msra.mxu0 0.0
      %863 = vmatprep.subr.mxu0 0.0
      %864 = vmatpush1.msra.mxu0 0.0
      %865 = vmatprep.subr.mxu0 0.0
      %866 = vmatpush1.msra.mxu0 0.0
      %867 = vmatprep.subr.mxu0 0.0
      %868 = vmatpush1.msra.mxu0 0.0
      %869 = vmatprep.subr.mxu0 0.0
      %870 = vmatpush1.msra.mxu0 0.0
      %871 = vmatprep.subr.mxu0 0.0
      %872 = vmatpush1.msra.mxu0 0.0
      %873 = vmatprep.subr.mxu0 0.0
      %874 = vmatpush1.msra.mxu0 0.0
      %875 = vmatprep.subr.mxu0 0.0
      %876 = vmatpush1.msra.mxu0 0.0
      %877 = vmatprep.subr.mxu0 0.0
      %878 = vmatpush1.msra.mxu0 0.0
      %879 = vmatprep.subr.mxu0 0.0
      %880 = vmatpush1.msra.mxu0 0.0
      %881 = vmatprep.subr.mxu0 %v836
      %882 = vmatpush1.msra.mxu0 %v834
      %883 = vmatprep.subr.mxu0 %v830
      %884 = vmatpush1.msra.mxu0 %v828
      %885 = vmatprep.subr.mxu0 %v824
      %886 = vmatpush1.msra.mxu0 %v822
      %887 = vmatprep.subr.mxu0 %v818
      %888 = vmatpush1.msra.mxu0 %v816
      %889 = vmatprep.subr.mxu0 0.0
      %890 = vmatpush2.msra.mxu0 0.0
      %891 = vmatprep.subr.mxu0 0.0
      %892 = vmatpush2.msra.mxu0 0.0
      %893 = vmatprep.subr.mxu0 0.0
      %894 = vmatpush2.msra.mxu0 0.0
      %895 = vmatprep.subr.mxu0 0.0
      %896 = vmatpush2.msra.mxu0 0.0
      %897 = vmatprep.subr.mxu0 0.0
      %898 = vmatpush2.msra.mxu0 0.0
      %899 = vmatprep.subr.mxu0 0.0
      %900 = vmatpush2.msra.mxu0 0.0
      %901 = vmatprep.subr.mxu0 0.0
      %902 = vmatpush2.msra.mxu0 0.0
      %903 = vmatprep.subr.mxu0 0.0
      %904 = vmatpush2.msra.mxu0 0.0
      %905 = vmatprep.subr.mxu0 0.0
      %906 = vmatpush2.msra.mxu0 0.0
      %907 = vmatprep.subr.mxu0 0.0
      %908 = vmatpush2.msra.mxu0 0.0
      %909 = vmatprep.subr.mxu0 0.0
      %910 = vmatpush2.msra.mxu0 0.0
      %911 = vmatprep.subr.mxu0 0.0
      %912 = vmatpush2.msra.mxu0 0.0
      %913 = vmatprep.subr.mxu0 0.0
      %914 = vmatpush2.msra.mxu0 0.0
      %915 = vmatprep.subr.mxu0 0.0
      %916 = vmatpush2.msra.mxu0 0.0
      %917 = vmatprep.subr.mxu0 0.0
      %918 = vmatpush2.msra.mxu0 0.0
      %919 = vmatprep.subr.mxu0 0.0
      %920 = vmatpush2.msra.mxu0 0.0
      %921 = vmatprep.mubr.f32.mxu0 0.0
      %922 = vmatmul.mubr.f32.gmra.mxu0 %v855
      %v923 = vpop.f32.mrf.mxu0
      %v924 = vadd.f32 %v851, %v923
      %v925 = vpop.f32.mrf.mxu0
      %v926 = vadd.f32 %v851, %v925
      %927 = vdwg.mxu0
      %v930 = vcombine.low %v924, %v926
      %932 = vst [vmem:[%s543] sm:$0x77] %v930
      %s933 = smul.u32 2, %s29
      %p934 = scmp.lt.s32.totalorder %s28, 1
      %s935 = scalar_select %p934, %s28, 1
      %p936 = scmp.lt.s32.totalorder %s933, 1
      %s937 = scalar_select %p936, %s933, 1
      %s938 = smul.addr %s935, 8
      %s939 = sadd.s32 %s937, %s938
      %s940 = smul.addr %s939, 8
      %s941 = scalar_lea.vmem %s11, %s940
      %s942 = smul.u32 2, %s29
      %p943 = scmp.lt.s32.totalorder %s28, 1
      %s944 = scalar_select %p943, %s28, 1
      %p945 = scmp.lt.s32.totalorder %s942, 1
      %s946 = scalar_select %p945, %s942, 1
      %s947 = smul.addr %s944, 2
      %s948 = sadd.s32 %s946, %s947
      %s949 = smul.addr %s948, 4
      %s950 = scalar_lea.vmem %s12, %s949
      // Predicated region
      $region65: #{_lambda_.1} parent=63 // pred_check
        %p951 = pneg %p314
      $region66: #{_lambda_.1} parent=63 // pred_check_branch
        %953 = sbr.rel (%p951) target = $region68
      $region67: #{_lambda_.1} parent=63 // pred_region
        %s954 = smul.u32 2, %s29
      $region68: #{_lambda_.1} parent=63 // pred_fallthru
        _
      // Predicated region
      $region69: #{_lambda_.1} parent=63 // pred_check
        %p955 = pneg %p342
      $region70: #{_lambda_.1} parent=63 // pred_check_branch
        %957 = sbr.rel (%p955) target = $region72
      $region71: #{_lambda_.1} parent=63 // pred_region
        %s958 = smul.u32 2, %s29
      $region72: #{_lambda_.1} parent=63 // pred_fallthru
        _
    $region64: #{_lambda_.1} parent=5 // pred_fallthru
      _
    %p959 = scmp.le.s32.totalorder 2, %s19
    // Predicated region
    $region73: #{_lambda_.1} parent=5 // pred_check
      %p960 = pneg %p959
    $region74: #{_lambda_.1} parent=5 // pred_check_branch
      %962 = sbr.rel (%p960) target = $region76
    $region75: #{_lambda_.1} parent=5 // pred_region
      %s963 = ssub.s32 %s19, 2
      // Predicated region
      $region77: #{_lambda_.1} parent=75 // pred_check
        %p964 = pneg %p320
      $region78: #{_lambda_.1} parent=75 // pred_check_branch
        %966 = sbr.rel (%p964) target = $region80
      $region79: #{_lambda_.1} parent=75 // pred_region
        %s967 = smul.u32 2, %s31
        %p968 = scmp.lt.s32.totalorder %s30, 1
        %s969 = scalar_select %p968, %s30, 1
        %p970 = scmp.lt.s32.totalorder %s967, 1
        %s971 = scalar_select %p970, %s967, 1
        %s972 = smul.addr %s969, 8
        %s973 = sadd.s32 %s971, %s972
        %s974 = smul.addr %s973, 8
        %s975 = scalar_lea.vmem %s11, %s974
      $region80: #{_lambda_.1} parent=75 // pred_fallthru
        _
      // Predicated region
      $region81: #{_lambda_.1} parent=75 // pred_check
        %p976 = pneg %p348
      $region82: #{_lambda_.1} parent=75 // pred_check_branch
        %978 = sbr.rel (%p976) target = $region84
      $region83: #{_lambda_.1} parent=75 // pred_region
        %s979 = smul.u32 2, %s31
        %p980 = scmp.lt.s32.totalorder %s30, 1
        %s981 = scalar_select %p980, %s30, 1
        %p982 = scmp.lt.s32.totalorder %s979, 1
        %s983 = scalar_select %p982, %s979, 1
        %s984 = smul.addr %s981, 2
        %s985 = sadd.s32 %s983, %s984
        %s986 = smul.addr %s985, 4
        %s987 = scalar_lea.vmem %s12, %s986
      $region84: #{_lambda_.1} parent=75 // pred_fallthru
        _
    $region76: #{_lambda_.1} parent=5 // pred_fallthru
      _
  $region6: #{_lambda_.1} parent=0 // loop_footer
    %s23 = sadd.s32 1, %s19
  $region7: #{_lambda_.1} parent=0 // loop_footer_branch
    %18 = sbr.rel target = $region3
  $region8: #{_lambda_.1} parent=0 // loop_exit
    _

</llo_original>
